<compile_context>
chip_gen: v6e
topology: v6e:2x2x1
jax: 0.10.0
libtpu: 0.0.40
codegen_flags: <defaults>
</compile_context>

<pallas_src>
from math import log, pi

import jax
import jax.numpy as jnp
from jax import lax
from jax.experimental import pallas as pl
from jax.experimental.pallas import tpu as pltpu

LOG_2PI = log(2.0 * pi)
_LANE_CANDIDATES = (1024, 512, 256, 128)
_VMEM_CAP_BYTES = 48 << 20      # stay comfortably under v7x's 64 MiB physical VMEM


def _is_v7x():
    try:
        return "v7" in jax.devices()[0].device_kind.lower()
    except Exception:
        return False


def _pick_lanes(n):
    """Largest lane width in {1024,512,256,128} that divides n (else None)."""
    for lanes in _LANE_CANDIDATES:
        if n % lanes == 0:
            return lanes
    return None


def _make_sumsq_kernel(rb, lanes, rows, steps, need_mask):
    """Build the partial-sum-of-squares kernel for fixed (static) tiling."""

    def kernel(z_ref, acc_ref):
        c = pl.program_id(0)            # split (TensorCore) index
        s = pl.program_id(1)            # reduction-axis step

        @pl.when(s == 0)
        def _():
            acc_ref[...] = jnp.zeros_like(acc_ref)

        zt = z_ref[...].astype(jnp.float32)
        zsq = zt * zt                                     # VPU
        if need_mask:
            # Logical row offset of this block (independent of the clamped DMA
            # window); rows past the true end contribute exactly zero.
            row0 = (c * steps + s) * rb
            ridx = lax.broadcasted_iota(jnp.int32, (rb, 1), 0) + row0
            zsq = jnp.where(ridx < rows, zsq, 0.0)
        # Reduce only across sublane groups of 8 rows: splits the sublane axis
        # at multiples of 8 (no (8,128)-tile crossing) -> plain vector adds.
        acc_ref[...] += zsq.reshape(rb // 8, 8, lanes).sum(axis=0)

    return kernel


def _sum_squares_pallas(z, *, num_splits, core_parallel, target_block_bytes):
    """sum(z**2) (f32) via a streaming Pallas reduce. Requires z.size % 128 == 0."""
    n = z.size
    lanes = _pick_lanes(n)
    assert lanes is not None
    itemsize = jnp.dtype(z.dtype).itemsize
    rows = n // lanes
    assert rows >= 8

    # Rows per block: as many as the byte budget allows (multiple of 8, <= rows).
    rb = max(8, (target_block_bytes // (lanes * itemsize)) // 8 * 8)
    rb = min(rb, max(8, (rows // 8) * 8))

    # Conservative VMEM estimate: double-buffered input block + ~3 full-tile
    # f32 temporaries (cast / square / mask) + headroom.  Shrink rb to fit.
    def vmem_est(r):
        return 2 * r * lanes * itemsize + 12 * r * lanes + (4 << 20)

    while rb > 8 and vmem_est(rb) > _VMEM_CAP_BYTES:
        rb = max(8, (rb // 2) // 8 * 8)

    nb = pl.cdiv(rows, rb)                    # total row-blocks
    steps = pl.cdiv(nb, num_splits)           # blocks per split (reduction axis)
    need_mask = num_splits * steps * rb != rows

    z2d = z.reshape(rows, lanes)              # contiguous reshape: no HBM copy

    kernel = _make_sumsq_kernel(rb, lanes, rows, steps, need_mask)

    def z_index_map(c, s):
        # Clamp so every DMA window starts in-bounds; logically-invalid rows of
        # over-covering blocks are zeroed by the in-kernel mask instead.
        return (jnp.minimum(c * steps + s, nb - 1), 0)

    lead_sem = (pltpu.CORE_PARALLEL if (core_parallel and num_splits > 1)
                else pltpu.ARBITRARY)

    partials = pl.pallas_call(
        kernel,
        out_shape=jax.ShapeDtypeStruct((num_splits * 8, lanes), jnp.float32),
        grid_spec=pltpu.PrefetchScalarGridSpec(
            num_scalar_prefetch=0,
            grid=(num_splits, steps),                       # reduction axis last
            in_specs=[pl.BlockSpec((rb, lanes), z_index_map)],
            out_specs=pl.BlockSpec((8, lanes), lambda c, s: (c, 0)),
        ),
        compiler_params=pltpu.CompilerParams(
            dimension_semantics=(lead_sem, pltpu.ARBITRARY),
            vmem_limit_bytes=int(vmem_est(rb)),
        ),
    )(z2d)

    # Tiny final reduce (num_splits*8*lanes elements) in plain XLA.
    return jnp.sum(partials, dtype=jnp.float32)


def waveflow_loss(z, logdet, *, sigma=1.0, num_splits=None, core_parallel=None,
                  target_block_bytes=None, min_pallas_elems=1 << 16,
                  force_pallas=False):
    """Pallas implementation of WaveFlowLoss.forward((z, logdet)).

    `sigma` is kept for parity with the PyTorch module; it is unused in forward.
    """
    del sigma
    B, T = z.shape
    n = B * T

    lanes = _pick_lanes(n)
    pallas_ok = (lanes is not None) and (n // lanes) >= 8
    if not pallas_ok or (not force_pallas and n < min_pallas_elems):
        # Ragged (n not a multiple of 128) or tiny inputs: the fused XLA
        # reduction reads z exactly once — better than any pad/slice copy, and
        # the pallas_call fixed cost dwarfs tiny streams anyway.
        # TODO(synk): fully zero-copy Pallas path for n % 128 != 0 would need a
        # manual-DMA 1-D gather of the tail; not worth it for a loss scalar.
        return waveflow_loss_ref(z, logdet)

    v7 = _is_v7x()
    if num_splits is None:
        num_splits = 2 if v7 else 1            # 2 TensorCores on v7x, 1 elsewhere
    if core_parallel is None:
        core_parallel = v7 and num_splits > 1
    if target_block_bytes is None:
        target_block_bytes = (8 << 20) if v7 else (4 << 20)

    sum_sq = _sum_squares_pallas(
        z, num_splits=num_splits, core_parallel=core_parallel,
        target_block_bytes=target_block_bytes)

    n_f = jnp.float32(n)
    # -0.5 * (log(2*pi) + z^2).sum() == -0.5 * (N*log(2*pi) + sum(z^2))
    log_p = (-0.5 * (n_f * LOG_2PI + sum_sq)) / n_f
    logdet_term = jnp.mean(jnp.asarray(logdet).astype(jnp.float32)) / n_f
    return -(log_p + logdet_term)


def waveflow_loss_ref(z, logdet):
    """Pure-JAX reference mirroring the PyTorch module."""
    B, T = z.shape
    zf = z.astype(jnp.float32)
    log_p_sum = -0.5 * jnp.sum(LOG_2PI + zf * zf)
    log_p = log_p_sum / (B * T)
    logdet_m = jnp.mean(jnp.asarray(logdet).astype(jnp.float32)) / (B * T)
    return -(log_p + logdet_m)


if __name__ == "__main__":
    key = jax.random.PRNGKey(0)
    kz, kl = jax.random.split(key)

    # Case 1: f32 z, per-batch logdet; B*T % 1024 == 0 -> zero-copy slab, no mask.
    B, T = 2, 8192
    z = jax.random.normal(kz, (B, T), dtype=jnp.float32)
    logdet = jax.random.normal(kl, (B,), dtype=jnp.float32)
    loss = jax.block_until_ready(waveflow_loss(z, logdet, force_pallas=True))
    loss_ref = waveflow_loss_ref(z, logdet)
    assert jnp.allclose(loss, loss_ref, rtol=1e-5, atol=1e-5), (loss, loss_ref)

    # Case 2: bf16 z (native-dtype streaming), B*T % 1024 != 0 but % 512 == 0 ->
    # lanes=512; the partial last row-block exercises the in-kernel iota mask.
    B2, T2 = 3, 5632
    z2 = jax.random.normal(kz, (B2, T2), dtype=jnp.bfloat16)
    logdet2 = jnp.float32(123.4)
    loss2 = jax.block_until_ready(waveflow_loss(z2, logdet2, force_pallas=True))
    loss_ref2 = waveflow_loss_ref(z2, logdet2)
    assert jnp.allclose(loss2, loss_ref2, rtol=1e-4, atol=1e-4), (loss2, loss_ref2)

    # Case 3: 2-way split path (the layout v7x uses per TensorCore) with a grid
    # that over-covers the rows -> exercises the clamped index_map + fully
    # masked block.  core_parallel=False so it also runs on 1-TC chips.
    B3, T3 = 4, 5120
    z3 = jax.random.normal(kz, (B3, T3), dtype=jnp.float32)
    logdet3 = jax.random.normal(kl, (B3,), dtype=jnp.float32)
    loss3 = jax.block_until_ready(
        waveflow_loss(z3, logdet3, force_pallas=True, num_splits=2,
                      core_parallel=False, target_block_bytes=8 * 1024 * 4))
    loss_ref3 = waveflow_loss_ref(z3, logdet3)
    assert jnp.allclose(loss3, loss_ref3, rtol=1e-5, atol=1e-5), (loss3, loss_ref3)

    # Case 4: ragged length (B*T % 128 != 0) -> single-read XLA fallback (no pad copy).
    B4, T4 = 3, 1000
    z4 = jax.random.normal(kz, (B4, T4), dtype=jnp.bfloat16)
    loss4 = jax.block_until_ready(waveflow_loss(z4, jnp.float32(1.5)))
    loss_ref4 = waveflow_loss_ref(z4, jnp.float32(1.5))
    assert jnp.allclose(loss4, loss_ref4, rtol=1e-4, atol=1e-4), (loss4, loss_ref4)

    print("KERNEL_OK")
</pallas_src>

<mosaic_0001>
module attributes {stable_mosaic.version = 11 : i64} {
  func.func @kernel(%arg0: i32, %arg1: i32, %arg2: memref<16x1024xf32, #tpu.memory_space<vmem>>, %arg3: memref<8x1024xf32, #tpu.memory_space<vmem>>) attributes {dimension_semantics = [#tpu.dimension_semantics<arbitrary>, #tpu.dimension_semantics<arbitrary>], iteration_bounds = array<i64: 1, 1>, scalar_prefetch = 0 : i64, scratch_operands = 0 : i64, tpu.core_type = #tpu.core_type<tc>, window_params = [{transform_indices = @transform_0, window_bounds = array<i64: 16, 1024>}, {transform_indices = @transform_1, window_bounds = array<i64: 8, 1024>}]} {
    %c0_i32 = arith.constant 0 : i32
    %0 = arith.cmpi eq, %arg1, %c0_i32 : i32
    %1 = arith.extui %0 : i1 to i32
    %c0_i32_0 = arith.constant 0 : i32
    %2 = arith.cmpi ne, %1, %c0_i32_0 : i32
    scf.if %2 {
      %cst_6 = arith.constant 0.000000e+00 : f32
      %10 = vector.broadcast %cst_6 : f32 to vector<8x1024xf32>
      %c0_7 = arith.constant 0 : index
      %c0_8 = arith.constant 0 : index
      %11 = vector.load %arg3[%c0_7, %c0_8] : memref<8x1024xf32, #tpu.memory_space<vmem>>, vector<8x1024xf32>
      tpu.vector_store %arg3[%c0_7, %c0_8], %10 {strides = array<i32>} : memref<8x1024xf32, #tpu.memory_space<vmem>>, vector<8x1024xf32>,
    } else {
    }
    %c0 = arith.constant 0 : index
    %c0_1 = arith.constant 0 : index
    %3 = vector.load %arg2[%c0, %c0_1] : memref<16x1024xf32, #tpu.memory_space<vmem>>, vector<16x1024xf32>
    %4 = arith.mulf %3, %3 : vector<16x1024xf32>
    %c0_2 = arith.constant 0 : index
    %c0_3 = arith.constant 0 : index
    %5 = vector.load %arg3[%c0_2, %c0_3] : memref<8x1024xf32, #tpu.memory_space<vmem>>, vector<8x1024xf32>
    %6 = vector.shape_cast %4 : vector<16x1024xf32> to vector<2x8x1024xf32>
    %cst = arith.constant dense<0.000000e+00> : vector<8x1024xf32>
    %7 = vector.multi_reduction <add>, %6, %cst [0] : vector<2x8x1024xf32> to vector<8x1024xf32>
    %8 = arith.addf %5, %7 : vector<8x1024xf32>
    %c0_4 = arith.constant 0 : index
    %c0_5 = arith.constant 0 : index
    %9 = vector.load %arg3[%c0_4, %c0_5] : memref<8x1024xf32, #tpu.memory_space<vmem>>, vector<8x1024xf32>
    tpu.vector_store %arg3[%c0_4, %c0_5], %8 {strides = array<i32>} : memref<8x1024xf32, #tpu.memory_space<vmem>>, vector<8x1024xf32>,
    return
  }
  func.func @transform_0(%arg0: i32, %arg1: i32) -> (i32, i32) {
    %c1_i32 = arith.constant 1 : i32
    %0 = arith.muli %arg0, %c1_i32 : i32
    %1 = arith.addi %0, %arg1 : i32
    %c0_i32 = arith.constant 0 : i32
    %2 = arith.minsi %1, %c0_i32 : i32
    %c0_i32_0 = arith.constant 0 : i32
    %c0_i32_1 = arith.constant 0 : i32
    return %2, %c0_i32_0 : i32, i32
  }
  func.func @transform_1(%arg0: i32, %arg1: i32) -> (i32, i32) {
    %c0_i32 = arith.constant 0 : i32
    %c0_i32_0 = arith.constant 0 : i32
    return %arg0, %c0_i32 : i32, i32
  }
}

</mosaic_0001>

<llo_original>
// kernel: tpu_custom_call.1
$region0: #{tpu_custom_call.1}
  #allocation0 [shape = 'u32[]', space=smem, size = 0x4, offset = 0x4, fixed_abs, tag = 'smem constant byte address 0x4 - core index']
  #allocation1 [shape = 'u32[144,128]{1,0:T(1,128)}', space=vmem, size = 0x12000, scoped, tag = 'internal scratch']
  %s0 = inlined_call_operand.hbm [shape: f32[16,1024], index: 0, kind: input, shape index: {}]
  %s1 = inlined_call_operand.hbm [shape: f32[8,1024], index: 1, kind: output, shape index: {}]
  %s2 = sld [smem:[#allocation0]]
  $region22: #{tpu_custom_call.1} parent=0
    _
  %s4 = ssub.s32 1, %s2
  %s5 = scalar_select 0, %s4, %s2
  $region1: #{tpu_custom_call.1} parent=0
    #allocation2 [shape = 'u8[65536]{0}', space=vmem, size = 0x10000, scoped, tag = 'input window, operand 0, single buffered']
    #allocation3 [shape = 's32[1]{0}', space=sflag, size = 0x4, scoped, tag = 'scoped memory for tpu_custom_call.1']
    #allocation4 [shape = 's32[1]{0}', space=sflag, size = 0x4, scoped, tag = 'scoped memory for tpu_custom_call.1']
    #allocation5 [shape = 'u8[32768]{0}', space=vmem, size = 0x8000, scoped, tag = 'output window, operand 0, single buffered']
    %6 = vsyncpa [#allocation3], 0
    %7 = vsyncpa [#allocation4], 0
    // Predicated region
    $region2: #{tpu_custom_call.1} parent=1 // pred_check
      _
    $region3: #{tpu_custom_call.1} parent=1 // pred_check_branch
      %9 = sbr.rel (0) target = $region5
    $region4: #{tpu_custom_call.1} parent=1 // pred_region
      %s10 = sadd.s32 0, 0
      %p11 = scmp.lt.s32.totalorder %s10, 0
      %s12 = scalar_select %p11, %s10, 0
      %s13 = smul.u32 2, %s12
      %s15 = ssub.s32 2048, 2048
      %16 = vsyncadd [#allocation3], %s15
      %s17 = smul.addr %s13, 8
      %s18 = smul.addr %s17, 128
      %s19 = scalar_lea.hbm %s0, %s18
      %s20 = sshll.u32 [#allocation2], 4
      %s21 = int_to_ptr.vmem [resolvable:$true] %s20
      %26 = dma.hbm_to_vmem [thread:$0]  %s19, 2048, %s21, [#allocation3], 1024, 1024, 64
    $region5: #{tpu_custom_call.1} parent=1 // pred_fallthru
      _
    // Predicated region
    $region6: #{tpu_custom_call.1} parent=1 // pred_check
      _
    $region7: #{tpu_custom_call.1} parent=1 // pred_check_branch
      %28 = sbr.rel (0) target = $region9
    $region8: #{tpu_custom_call.1} parent=1 // pred_region
      %29 = dma.done [#allocation3], 2048
    $region9: #{tpu_custom_call.1} parent=1 // pred_fallthru
      _
    %s30 = sadd.s32 0, 0
    %p31 = scmp.lt.s32.totalorder %s30, 0
    %s32 = scalar_select %p31, %s30, 0
    %s33 = smul.u32 2, %s32
    %p34 = scmp.eq.s32.totalorder 0, 0
    // Predicated region
    $region10: #{tpu_custom_call.1} parent=1 // pred_check
      %p35 = pneg %p34
    $region11: #{tpu_custom_call.1} parent=1 // pred_check_branch
      %37 = sbr.rel (%p35) target = $region13
    $region12: #{tpu_custom_call.1} parent=1 // pred_region
      %38 = vst [vmem:[#allocation5] sm:$0xff] 0.0
      %39 = vst [vmem:[#allocation5 + $0x8] sm:$0xff] 0.0
      %40 = vst [vmem:[#allocation5 + $0x10] sm:$0xff] 0.0
      %41 = vst [vmem:[#allocation5 + $0x18] sm:$0xff] 0.0
      %42 = vst [vmem:[#allocation5 + $0x20] sm:$0xff] 0.0
      %43 = vst [vmem:[#allocation5 + $0x28] sm:$0xff] 0.0
      %44 = vst [vmem:[#allocation5 + $0x30] sm:$0xff] 0.0
      %45 = vst [vmem:[#allocation5 + $0x38] sm:$0xff] 0.0
    $region13: #{tpu_custom_call.1} parent=1 // pred_fallthru
      _
    %v46 = vld [vmem:[#allocation2] sm:$0xff]
    %v47 = vld [vmem:[#allocation2 + $0x8] sm:$0xff]
    %v48 = vld [vmem:[#allocation2 + $0x10] sm:$0xff]
    %v49 = vld [vmem:[#allocation2 + $0x18] sm:$0xff]
    %v50 = vld [vmem:[#allocation2 + $0x20] sm:$0xff]
    %v51 = vld [vmem:[#allocation2 + $0x28] sm:$0xff]
    %v52 = vld [vmem:[#allocation2 + $0x30] sm:$0xff]
    %v53 = vld [vmem:[#allocation2 + $0x38] sm:$0xff]
    %v54 = vld [vmem:[#allocation2 + $0x40] sm:$0xff]
    %v55 = vld [vmem:[#allocation2 + $0x48] sm:$0xff]
    %v56 = vld [vmem:[#allocation2 + $0x50] sm:$0xff]
    %v57 = vld [vmem:[#allocation2 + $0x58] sm:$0xff]
    %v58 = vld [vmem:[#allocation2 + $0x60] sm:$0xff]
    %v59 = vld [vmem:[#allocation2 + $0x68] sm:$0xff]
    %v60 = vld [vmem:[#allocation2 + $0x70] sm:$0xff]
    %v61 = vld [vmem:[#allocation2 + $0x78] sm:$0xff]
    %v62 = vmul.f32 %v46, %v46
    %v63 = vmul.f32 %v47, %v47
    %v64 = vmul.f32 %v48, %v48
    %v65 = vmul.f32 %v49, %v49
    %v66 = vmul.f32 %v50, %v50
    %v67 = vmul.f32 %v51, %v51
    %v68 = vmul.f32 %v52, %v52
    %v69 = vmul.f32 %v53, %v53
    %v70 = vmul.f32 %v54, %v54
    %v71 = vmul.f32 %v55, %v55
    %v72 = vmul.f32 %v56, %v56
    %v73 = vmul.f32 %v57, %v57
    %v74 = vmul.f32 %v58, %v58
    %v75 = vmul.f32 %v59, %v59
    %v76 = vmul.f32 %v60, %v60
    %v77 = vmul.f32 %v61, %v61
    %v78 = vld [vmem:[#allocation5] sm:$0xff]
    %v79 = vld [vmem:[#allocation5 + $0x8] sm:$0xff]
    %v80 = vld [vmem:[#allocation5 + $0x10] sm:$0xff]
    %v81 = vld [vmem:[#allocation5 + $0x18] sm:$0xff]
    %v82 = vld [vmem:[#allocation5 + $0x20] sm:$0xff]
    %v83 = vld [vmem:[#allocation5 + $0x28] sm:$0xff]
    %v84 = vld [vmem:[#allocation5 + $0x30] sm:$0xff]
    %v85 = vld [vmem:[#allocation5 + $0x38] sm:$0xff]
    %v86 = vadd.f32 %v62, %v70
    %v87 = vadd.f32 %v63, %v71
    %v88 = vadd.f32 %v64, %v72
    %v89 = vadd.f32 %v65, %v73
    %v90 = vadd.f32 %v66, %v74
    %v91 = vadd.f32 %v67, %v75
    %v92 = vadd.f32 %v68, %v76
    %v93 = vadd.f32 %v69, %v77
    %v94 = vadd.f32 %v78, %v86
    %v95 = vadd.f32 %v79, %v87
    %v96 = vadd.f32 %v80, %v88
    %v97 = vadd.f32 %v81, %v89
    %v98 = vadd.f32 %v82, %v90
    %v99 = vadd.f32 %v83, %v91
    %v100 = vadd.f32 %v84, %v92
    %v101 = vadd.f32 %v85, %v93
    %102 = vst [vmem:[#allocation5] sm:$0xff] %v94
    %103 = vst [vmem:[#allocation5 + $0x8] sm:$0xff] %v95
    %104 = vst [vmem:[#allocation5 + $0x10] sm:$0xff] %v96
    %105 = vst [vmem:[#allocation5 + $0x18] sm:$0xff] %v97
    %106 = vst [vmem:[#allocation5 + $0x20] sm:$0xff] %v98
    %107 = vst [vmem:[#allocation5 + $0x28] sm:$0xff] %v99
    %108 = vst [vmem:[#allocation5 + $0x30] sm:$0xff] %v100
    %109 = vst [vmem:[#allocation5 + $0x38] sm:$0xff] %v101
    // Predicated region
    $region14: #{tpu_custom_call.1} parent=1 // pred_check
      _
    $region15: #{tpu_custom_call.1} parent=1 // pred_check_branch
      %111 = sbr.rel (0) target = $region17
    $region16: #{tpu_custom_call.1} parent=1 // pred_region
      %s113 = ssub.s32 1024, 1024
      %114 = vsyncadd [#allocation4], %s113
      %s116 = sshll.u32 [#allocation5], 4
      %s117 = int_to_ptr.vmem [resolvable:$true] %s116
      %119 = dma.vmem_to_hbm [thread:$0]  %s117, 1024, %s1, [#allocation4]
    $region17: #{tpu_custom_call.1} parent=1 // pred_fallthru
      _
    // Predicated region
    $region18: #{tpu_custom_call.1} parent=1 // pred_check
      _
    $region19: #{tpu_custom_call.1} parent=1 // pred_check_branch
      %121 = sbr.rel (0) target = $region21
    $region20: #{tpu_custom_call.1} parent=1 // pred_region
      %122 = dma.done [#allocation4], 1024
    $region21: #{tpu_custom_call.1} parent=1 // pred_fallthru
      _
    %123 = vsyncpa [#allocation3], 1
    %124 = vsyncpa [#allocation4], 1

</llo_original>
